<compile_context>
chip_gen: v6e
topology: v6e:2x2x1
jax: 0.10.0
libtpu: 0.0.40
codegen_flags: <defaults>
</compile_context>

<pallas_src>
import numpy as np
import jax
import jax.numpy as jnp
from jax.experimental import pallas as pl
from jax.experimental.pallas import tpu as pltpu

_VMEM_LIMIT = 32 * 1024 * 1024  # safe on v5e/v6e/v7x; raise on v6e for bigger tiles


def _round_up(x, m):
    return (x + m - 1) // m * m


# ---------------------------------------------------------------------------
# Kernel 1: per-class errors  err[c, p] = |(labels[p] == c) - probas[c, p]|
# (mem-bound elementwise pass, pixel-tiled, "parallel" grid)
# ---------------------------------------------------------------------------
def _errors_kernel(probas_ref, labels_ref, err_ref):
    Cp, T = err_ref.shape
    class_ids = jax.lax.broadcasted_iota(jnp.int32, (Cp, T), 0)
    fg = (labels_ref[...] == class_ids).astype(jnp.float32)   # (1,T) vs (Cp,T)
    err_ref[...] = jnp.abs(fg - probas_ref[...])


# ---------------------------------------------------------------------------
# Kernel 2: blocked Lovasz-grad scan over sorted (errors, labels) tiles.
#   per-class carry: running cumsum of fg; per-class loss accumulator.
# ---------------------------------------------------------------------------
def _lovasz_scan_kernel(gts_ref, u_ref, err_ref, lab_ref, out_ref,
                        cumfg_ref, loss_ref):
    Cp, T = err_ref.shape
    step = pl.program_id(0)

    @pl.when(step == 0)
    def _init():
        cumfg_ref[...] = jnp.zeros_like(cumfg_ref)
        loss_ref[...] = jnp.zeros_like(loss_ref)

    class_ids = jax.lax.broadcasted_iota(jnp.int32, (Cp, T), 0)
    lane_idx = jax.lax.broadcasted_iota(jnp.int32, (Cp, T), 1)

    # fg_sorted recomputed from sorted labels (kernel 1 never stores fg)
    fg = (lab_ref[...] == class_ids).astype(jnp.float32)        # (Cp, T)

    # Intra-tile inclusive cumsum along lanes via small triangular matmul.
    # Operands are exactly {0,1}: bf16 inputs + f32 accumulate are exact.
    cum_local = jnp.dot(fg.astype(jnp.bfloat16), u_ref[...],
                        preferred_element_type=jnp.float32)
    carry = cumfg_ref[...]                                      # (Cp, 1)
    cum = cum_local + carry                                     # global cumsum

    gts = gts_ref[...]                                          # (Cp, 1)
    # 1-based global position (exact in f32 for P < 2^24)
    pos = (step * T + lane_idx + 1).astype(jnp.float32)

    # union = gts + cumsum(1 - fg) = gts + (pos - cum)   (identity, no 2nd matmul)
    jac = 1.0 - (gts - cum) / jnp.maximum(gts + (pos - cum), 1.0)

    # jaccard at position p-1 from the same closed form (cum - fg, pos - 1);
    # this replaces the shift matmul / roll and also handles the tile boundary
    # for free. The max(.,1) only triggers for absent classes (gts == 0) at the
    # very first global position, which are masked out at the end anyway.
    cum_p = cum - fg
    jac_prev = 1.0 - (gts - cum_p) / jnp.maximum(gts + ((pos - 1.0) - cum_p), 1.0)
    grad = jac - jac_prev                                       # lovasz_grad

    loss_ref[...] += jnp.sum(err_ref[...] * grad, axis=-1, keepdims=True)
    cumfg_ref[...] = carry + jnp.sum(fg, axis=-1, keepdims=True)

    @pl.when(step == pl.num_programs(0) - 1)
    def _finalize():
        present = (gts > 0.0).astype(jnp.float32)               # classes='present'
        total = jnp.sum(loss_ref[...] * present, axis=0, keepdims=True)
        count = jnp.sum(present, axis=0, keepdims=True)
        out_ref[...] = jnp.where(count > 0.0,
                                 total / jnp.maximum(count, 1.0), 0.0)


# ---------------------------------------------------------------------------
# Wrapper (plain-JAX glue: layout, pad, single multi-operand sort)
# ---------------------------------------------------------------------------
def lovasz_softmax_pallas(probas, labels, *, tile_p=1024):
    B, C, H, W = probas.shape
    P = B * H * W

    T = _round_up(min(int(tile_p), _round_up(P, 128)), 128)
    P_pad = _round_up(P, T)
    C_pad = _round_up(C, 8)
    num_tiles = P_pad // T

    # class-major [C, P]; pixel index = b*H*W + h*W + w (matches labels flatten)
    probas_t = jnp.transpose(probas, (1, 0, 2, 3)).reshape(C, P).astype(jnp.float32)
    probas_t = jnp.pad(probas_t, ((0, C_pad - C), (0, P_pad - P)))
    labels_flat = labels.reshape(1, P).astype(jnp.int32)
    labels_flat = jnp.pad(labels_flat, ((0, 0), (0, P_pad - P)), constant_values=-1)
    # padded pixels: label=-1, proba=0  ->  fg=0, err=0  ->  contribute nothing.

    cparams = dict(vmem_limit_bytes=_VMEM_LIMIT)

    errors = pl.pallas_call(
        _errors_kernel,
        out_shape=jax.ShapeDtypeStruct((C_pad, P_pad), jnp.float32),
        grid=(num_tiles,),
        in_specs=[pl.BlockSpec((C_pad, T), lambda i: (0, i)),
                  pl.BlockSpec((1, T), lambda i: (0, i))],
        out_specs=pl.BlockSpec((C_pad, T), lambda i: (0, i)),
        compiler_params=pltpu.CompilerParams(
            dimension_semantics=("parallel",), **cparams),
    )(probas_t, labels_flat)

    # TODO(synk): descending sort has no clean Pallas TPU primitive; done in XLA
    # glue as ONE stable multi-operand sort (no argsort + gathers). Stable sort
    # may order ties differently than torch.sort(descending=True) -- the loss is
    # insensitive to this in practice.
    labels_bcast = jnp.broadcast_to(labels_flat, (C_pad, P_pad))
    neg_sorted, labels_sorted = jax.lax.sort(
        (-errors, labels_bcast), dimension=-1, num_keys=1, is_stable=True)
    errors_sorted = -neg_sorted

    # per-class ground-truth counts (cheap O(P) glue)
    gts = jnp.bincount(labels.reshape(-1).astype(jnp.int32), length=C)
    gts = jnp.pad(gts.astype(jnp.float32), (0, C_pad - C)).reshape(C_pad, 1)

    # (T, T) upper-triangular ones, built once, bf16 (exact 0/1), resident in VMEM
    ar = jnp.arange(T, dtype=jnp.int32)
    U = (ar[:, None] <= ar[None, :]).astype(jnp.bfloat16)

    loss = pl.pallas_call(
        _lovasz_scan_kernel,
        out_shape=jax.ShapeDtypeStruct((1, 1), jnp.float32),
        grid=(num_tiles,),
        in_specs=[pl.BlockSpec((C_pad, 1), lambda i: (0, 0)),   # gts (resident)
                  pl.BlockSpec((T, T), lambda i: (0, 0)),       # triangular const
                  pl.BlockSpec((C_pad, T), lambda i: (0, i)),   # errors_sorted
                  pl.BlockSpec((C_pad, T), lambda i: (0, i))],  # labels_sorted
        out_specs=pl.BlockSpec((1, 1), lambda i: (0, 0)),
        scratch_shapes=[pltpu.VMEM((C_pad, 1), jnp.float32),    # cumsum(fg) carry
                        pltpu.VMEM((C_pad, 1), jnp.float32)],   # per-class loss
        compiler_params=pltpu.CompilerParams(
            dimension_semantics=("arbitrary",), **cparams),     # sequential scan
    )(gts, U, errors_sorted, labels_sorted)
    return loss[0, 0]


# ---------------------------------------------------------------------------
# Pure numpy reference (mirrors the PyTorch code) for a sanity check
# ---------------------------------------------------------------------------
def _lovasz_ref(probas, labels):
    B, C, H, W = probas.shape
    p = np.transpose(np.asarray(probas), (0, 2, 3, 1)).reshape(-1, C)
    l = np.asarray(labels).reshape(-1)
    losses = []
    for c in range(C):
        fg = (l == c).astype(np.float32)
        if fg.sum() == 0:
            continue
        errors = np.abs(fg - p[:, c])
        perm = np.argsort(-errors, kind="stable")
        es, fs = errors[perm], fg[perm]
        gts = fs.sum()
        intersection = gts - np.cumsum(fs)
        union = gts + np.cumsum(1.0 - fs)
        jac = 1.0 - intersection / union
        jac[1:] = jac[1:] - jac[:-1]
        losses.append(float(np.dot(es, jac)))
    return float(np.mean(losses)) if losses else 0.0


if __name__ == "__main__":
    key = jax.random.PRNGKey(0)
    k1, k2 = jax.random.split(key)
    B, C, H, W = 2, 4, 16, 16

    logits = jax.random.normal(k1, (B, C, H, W), dtype=jnp.float32)
    probas = jax.nn.softmax(logits, axis=1)                    # class probabilities
    labels = jax.random.randint(k2, (B, H, W), 0, C, dtype=jnp.int32)

    # tile_p=128 -> 4 pixel tiles, exercising the blocked scan + carries.
    loss = lovasz_softmax_pallas(probas, labels, tile_p=128)
    loss = jax.block_until_ready(loss)

    ref = _lovasz_ref(probas, labels)
    assert abs(float(loss) - ref) < 1e-4, (float(loss), ref)
    print("KERNEL_OK")
</pallas_src>

<mosaic_0001>
module attributes {stable_mosaic.version = 11 : i64} {
  func.func @_errors_kernel(%arg0: i32, %arg1: memref<8x128xf32, #tpu.memory_space<vmem>>, %arg2: memref<1x128xi32, #tpu.memory_space<vmem>>, %arg3: memref<8x128xf32, #tpu.memory_space<vmem>>) attributes {dimension_semantics = [#tpu.dimension_semantics<parallel>], iteration_bounds = array<i64: 4>, scalar_prefetch = 0 : i64, scratch_operands = 0 : i64, tpu.core_type = #tpu.core_type<tc>, window_params = [{transform_indices = @transform_0, window_bounds = array<i64: 8, 128>}, {transform_indices = @transform_1, window_bounds = array<i64: 1, 128>}, {transform_indices = @transform_2, window_bounds = array<i64: 8, 128>}]} {
    %0 = tpu.iota {dimensions = array<i32: 0>} : vector<8x128xi32>
    %c0 = arith.constant 0 : index
    %c0_0 = arith.constant 0 : index
    %1 = vector.load %arg2[%c0, %c0_0] : memref<1x128xi32, #tpu.memory_space<vmem>>, vector<1x128xi32>
    %2 = vector.broadcast %1 : vector<1x128xi32> to vector<8x128xi32>
    %3 = arith.cmpi eq, %2, %0 : vector<8x128xi32>
    %4 = arith.extui %3 : vector<8x128xi1> to vector<8x128xi32>
    %5 = arith.sitofp %4 : vector<8x128xi32> to vector<8x128xf32>
    %c0_1 = arith.constant 0 : index
    %c0_2 = arith.constant 0 : index
    %6 = vector.load %arg1[%c0_1, %c0_2] : memref<8x128xf32, #tpu.memory_space<vmem>>, vector<8x128xf32>
    %7 = arith.subf %5, %6 : vector<8x128xf32>
    %8 = math.absf %7 : vector<8x128xf32>
    %c0_3 = arith.constant 0 : index
    %c0_4 = arith.constant 0 : index
    %9 = vector.load %arg3[%c0_3, %c0_4] : memref<8x128xf32, #tpu.memory_space<vmem>>, vector<8x128xf32>
    tpu.vector_store %arg3[%c0_3, %c0_4], %8 {strides = array<i32>} : memref<8x128xf32, #tpu.memory_space<vmem>>, vector<8x128xf32>,
    return
  }
  func.func @transform_0(%arg0: i32) -> (i32, i32) {
    %c0_i32 = arith.constant 0 : i32
    %c0_i32_0 = arith.constant 0 : i32
    return %c0_i32, %arg0 : i32, i32
  }
  func.func @transform_1(%arg0: i32) -> (i32, i32) {
    %c0_i32 = arith.constant 0 : i32
    %c0_i32_0 = arith.constant 0 : i32
    return %c0_i32, %arg0 : i32, i32
  }
  func.func @transform_2(%arg0: i32) -> (i32, i32) {
    %c0_i32 = arith.constant 0 : i32
    %c0_i32_0 = arith.constant 0 : i32
    return %c0_i32, %arg0 : i32, i32
  }
}

</mosaic_0001>

<llo_original>
// kernel: tpu_custom_call.1
$region0: #{tpu_custom_call.1}
  #allocation0 [shape = 'u32[]', space=smem, size = 0x4, offset = 0x4, fixed_abs, tag = 'smem constant byte address 0x4 - core index']
  #allocation1 [shape = 'u32[144,128]{1,0:T(1,128)}', space=vmem, size = 0x12000, scoped, tag = 'internal scratch']
  %s0 = inlined_call_operand.hbm [shape: f32[8,512], index: 0, kind: input, shape index: {}]
  %s1 = inlined_call_operand.hbm [shape: s32[1,512], index: 1, kind: input, shape index: {}]
  %s2 = inlined_call_operand.hbm [shape: f32[8,512], index: 2, kind: output, shape index: {}]
  %s3 = sld [smem:[#allocation0]]
  $region49: #{tpu_custom_call.1} parent=0
    _
  %s5 = ssub.s32 1, %s3
  %s6 = scalar_select 0, %s5, %s3
  $region1: #{tpu_custom_call.1} parent=0
    #allocation2 [shape = 'u8[8192]{0}', space=vmem, size = 0x2000, scoped, tag = 'input window, operand 0']
    #allocation3 [shape = 's32[2]{0}', space=sflag, size = 0x8, scoped, tag = 'scoped memory for tpu_custom_call.1']
    #allocation4 [shape = 's32[2]{0}', space=sflag, size = 0x8, scoped, tag = 'scoped memory for tpu_custom_call.1']
    #allocation5 [shape = 'u8[1024]{0}', space=vmem, size = 0x400, scoped, tag = 'input window, operand 1']
    #allocation6 [shape = 's32[2]{0}', space=sflag, size = 0x8, scoped, tag = 'scoped memory for tpu_custom_call.1']
    #allocation7 [shape = 'u8[8192]{0}', space=vmem, size = 0x2000, scoped, tag = 'output window, operand 0']
    %7 = vsyncpa [#allocation3], 0
    %s8 = scalar_lea.sflag [#allocation3], 1
    %9 = vsyncpa %s8, 0
    %10 = vsyncpa [#allocation6], 0
    %s11 = scalar_lea.sflag [#allocation6], 1
    %12 = vsyncpa %s11, 0
    %13 = vsyncpa [#allocation4], 0
    %s14 = scalar_lea.sflag [#allocation4], 1
    %15 = vsyncpa %s14, 0
    loop: start=0, step=1, limit=6
    $region2: #{tpu_custom_call.1} parent=1 // loop_pre_header
      _
    $region3: #{tpu_custom_call.1} parent=1 // loop_header
      %s17 = sphi 0, %s21
      %p18 = scmp.ge.s32.totalorder %s17, 6
      %s27 = sphi 0, %s29
      %s30 = sphi 0, %s27
      %s31 = sphi 0, %s30
      %s47 = sphi 0, %s31
      %s53 = sphi 0, %s55
      %s56 = sphi 0, %s53
      %s57 = sphi 0, %s56
      %s73 = sphi 0, %s57
      %s79 = sphi 0, %s81
      %s82 = sphi 0, %s79
      %s83 = sphi 0, %s82
      %s99 = sphi 0, %s83
    $region4: #{tpu_custom_call.1} parent=1 // loop_header_branch
      %20 = sbr.rel (%p18) target = $region8
    $region5: #{tpu_custom_call.1} parent=1 // loop_body
      %s22 = ssub.s32 %s17, 1
      %s23 = ssub.s32 %s17, 2
      %s24 = sadd.s32 %s17, 1
      %s25 = ssub.s32 %s17, %s24
      %p26 = scmp.eq.s32.totalorder %s25, 0
      %s28 = sadd.s32 %s27, 1
      %s29 = scalar_select %p26, %s27, %s28
      %p32 = pneg %p26
      %p33 = scmp.eq.s32.totalorder %s17, 3
      %p34 = por %p32, %p33
      %p35 = scmp.ne.s32.totalorder %s27, %s30
      %p36 = scmp.eq.s32.totalorder %s17, 0
      %p37 = por %p35, %p36
      %p38 = scmp.ne.s32.totalorder %s27, %s30
      %p39 = scmp.eq.s32.totalorder %s22, 3
      %p40 = por %p38, %p39
      %p41 = scmp.ne.s32.totalorder %s30, %s31
      %p42 = scmp.eq.s32.totalorder %s22, 0
      %p43 = por %p41, %p42
      %p44 = scmp.ne.s32.totalorder %s30, %s31
      %p45 = scmp.eq.s32.totalorder %s23, 3
      %p46 = por %p44, %p45
      %p48 = scmp.ne.s32.totalorder %s31, %s47
      %p49 = scmp.eq.s32.totalorder %s23, 0
      %p50 = por %p48, %p49
      %s51 = ssub.s32 %s17, %s24
      %p52 = scmp.eq.s32.totalorder %s51, 0
      %s54 = sadd.s32 %s53, 1
      %s55 = scalar_select %p52, %s53, %s54
      %p58 = pneg %p52
      %p59 = scmp.eq.s32.totalorder %s17, 3
      %p60 = por %p58, %p59
      %p61 = scmp.ne.s32.totalorder %s53, %s56
      %p62 = scmp.eq.s32.totalorder %s17, 0
      %p63 = por %p61, %p62
      %p64 = scmp.ne.s32.totalorder %s53, %s56
      %p65 = scmp.eq.s32.totalorder %s22, 3
      %p66 = por %p64, %p65
      %p67 = scmp.ne.s32.totalorder %s56, %s57
      %p68 = scmp.eq.s32.totalorder %s22, 0
      %p69 = por %p67, %p68
      %p70 = scmp.ne.s32.totalorder %s56, %s57
      %p71 = scmp.eq.s32.totalorder %s23, 3
      %p72 = por %p70, %p71
      %p74 = scmp.ne.s32.totalorder %s57, %s73
      %p75 = scmp.eq.s32.totalorder %s23, 0
      %p76 = por %p74, %p75
      %s77 = ssub.s32 %s17, %s24
      %p78 = scmp.eq.s32.totalorder %s77, 0
      %s80 = sadd.s32 %s79, 1
      %s81 = scalar_select %p78, %s79, %s80
      %p84 = pneg %p78
      %p85 = scmp.eq.s32.totalorder %s17, 3
      %p86 = por %p84, %p85
      %p87 = scmp.ne.s32.totalorder %s79, %s82
      %p88 = scmp.eq.s32.totalorder %s17, 0
      %p89 = por %p87, %p88
      %p90 = scmp.ne.s32.totalorder %s79, %s82
      %p91 = scmp.eq.s32.totalorder %s22, 3
      %p92 = por %p90, %p91
      %p93 = scmp.ne.s32.totalorder %s82, %s83
      %p94 = scmp.eq.s32.totalorder %s22, 0
      %p95 = por %p93, %p94
      %p96 = scmp.ne.s32.totalorder %s82, %s83
      %p97 = scmp.eq.s32.totalorder %s23, 3
      %p98 = por %p96, %p97
      %p100 = scmp.ne.s32.totalorder %s83, %s99
      %p101 = scmp.eq.s32.totalorder %s23, 0
      %p102 = por %p100, %p101
      %p103 = scmp.le.s32.totalorder 1, %s17
      %p104 = scmp.lt.s32.totalorder %s17, 5
      %p105 = pnand %p103, %p104
      %p106 = pneg %p105
      // Predicated region
      $region9: #{tpu_custom_call.1} parent=5 // pred_check
        _
      $region10: #{tpu_custom_call.1} parent=5 // pred_check_branch
        %108 = sbr.rel (%p105) target = $region12
      $region11: #{tpu_custom_call.1} parent=5 // pred_region
        %s109 = ssub.s32 %s17, 1
      $region12: #{tpu_custom_call.1} parent=5 // pred_fallthru
        _
      %p110 = scmp.lt.s32.totalorder %s17, 4
      // Predicated region
      $region13: #{tpu_custom_call.1} parent=5 // pred_check
        %p111 = pneg %p110
      $region14: #{tpu_custom_call.1} parent=5 // pred_check_branch
        %113 = sbr.rel (%p111) target = $region16
      $region15: #{tpu_custom_call.1} parent=5 // pred_region
        // Predicated region
        $region17: #{tpu_custom_call.1} parent=15 // pred_check
          %p114 = pneg %p37
        $region18: #{tpu_custom_call.1} parent=15 // pred_check_branch
          %116 = sbr.rel (%p114) target = $region20
        $region19: #{tpu_custom_call.1} parent=15 // pred_region
          %s117 = sand.u32 %s27, 1
          %s118 = scalar_lea.sflag [#allocation3], %s117
          %s119 = sand.u32 %s27, 1
          %s120 = smul.addr %s119, 8
          %s121 = scalar_lea.vmem [#allocation2], %s120
          %s123 = ssub.s32 128, 128
          %124 = vsyncadd %s118, %s123
          %s125 = smul.addr %s17, 128
          %s126 = scalar_lea.hbm %s0, %s125
          %s128 = sshll.u32 %s121, 4
          %s129 = int_to_ptr.vmem [resolvable:$true] %s128
          %131 = dma.hbm_to_vmem [thread:$0]  %s126, 128, %s129, %s118
        $region20: #{tpu_custom_call.1} parent=15 // pred_fallthru
          _
        // Predicated region
        $region21: #{tpu_custom_call.1} parent=15 // pred_check
          %p132 = pneg %p63
        $region22: #{tpu_custom_call.1} parent=15 // pred_check_branch
          %134 = sbr.rel (%p132) target = $region24
        $region23: #{tpu_custom_call.1} parent=15 // pred_region
          %s135 = sand.u32 %s53, 1
          %s136 = scalar_lea.sflag [#allocation6], %s135
          %s137 = sand.u32 %s53, 1
          %s138 = scalar_lea.vmem [#allocation5], %s137
          %s140 = ssub.s32 16, 16
          %141 = vsyncadd %s136, %s140
          %s142 = smul.addr %s17, 16
          %s143 = scalar_lea.hbm %s1, %s142
          %s145 = sshll.u32 %s138, 4
          %s146 = int_to_ptr.vmem [resolvable:$true] %s145
          %148 = dma.hbm_to_vmem [thread:$0]  %s143, 16, %s146, %s136
        $region24: #{tpu_custom_call.1} parent=15 // pred_fallthru
          _
      $region16: #{tpu_custom_call.1} parent=5 // pred_fallthru
        _
      %p149 = scmp.le.s32.totalorder 1, %s17
      %p150 = scmp.lt.s32.totalorder %s17, 5
      %p151 = pnand %p149, %p150
      %p152 = pneg %p151
      // Predicated region
      $region25: #{tpu_custom_call.1} parent=5 // pred_check
        _
      $region26: #{tpu_custom_call.1} parent=5 // pred_check_branch
        %154 = sbr.rel (%p151) target = $region28
      $region27: #{tpu_custom_call.1} parent=5 // pred_region
        %s155 = ssub.s32 %s17, 1
        %s156 = sand.u32 %s30, 1
        %s157 = scalar_lea.sflag [#allocation3], %s156
        %s158 = sand.u32 %s30, 1
        %s159 = smul.addr %s158, 8
        %s160 = scalar_lea.vmem [#allocation2], %s159
        // Predicated region
        $region29: #{tpu_custom_call.1} parent=27 // pred_check
          %p161 = pneg %p43
        $region30: #{tpu_custom_call.1} parent=27 // pred_check_branch
          %163 = sbr.rel (%p161) target = $region32
        $region31: #{tpu_custom_call.1} parent=27 // pred_region
          %164 = dma.done %s157, 128
        $region32: #{tpu_custom_call.1} parent=27 // pred_fallthru
          _
        %s165 = sand.u32 %s56, 1
        %s166 = scalar_lea.sflag [#allocation6], %s165
        %s167 = sand.u32 %s56, 1
        %s168 = scalar_lea.vmem [#allocation5], %s167
        // Predicated region
        $region33: #{tpu_custom_call.1} parent=27 // pred_check
          %p169 = pneg %p69
        $region34: #{tpu_custom_call.1} parent=27 // pred_check_branch
          %171 = sbr.rel (%p169) target = $region36
        $region35: #{tpu_custom_call.1} parent=27 // pred_region
          %172 = dma.done %s166, 16
        $region36: #{tpu_custom_call.1} parent=27 // pred_fallthru
          _
        %s173 = sand.u32 %s30, 1
        %s174 = scalar_lea.sflag [#allocation3], %s173
        %s175 = sand.u32 %s30, 1
        %s176 = smul.addr %s175, 8
        %s177 = scalar_lea.vmem [#allocation2], %s176
        %p178 = pneg %p43
        %p179 = pneg %p40
        %s180 = sand.u32 %s56, 1
        %s181 = scalar_lea.sflag [#allocation6], %s180
        %s182 = sand.u32 %s56, 1
        %s183 = scalar_lea.vmem [#allocation5], %s182
        %p184 = pneg %p69
        %p185 = pneg %p66
        %p186 = pneg %p95
        %p187 = pneg %p92
        %s188 = sand.u32 %s82, 1
        %s189 = scalar_lea.sflag [#allocation4], %s188
        %s190 = sand.u32 %s82, 1
        %s191 = smul.addr %s190, 8
        %s192 = scalar_lea.vmem [#allocation7], %s191
        %v193 = vlaneseq
        %v194 = vshrl.u32 %v193, 7
        %v195 = vld [vmem:[%s168] sm:$0x1]
        %v196 = vlaneseq
        %v197 = vshrl.u32 %v196, 7
        %v198 = vsub.s32 0, %v197
        %v199 = vrot.slane %v195, %v198
        %vm200 = vcmp.eq.s32.totalorder %v199, %v194
        %v201 = vsel %vm200, 1, 0
        %v202 = vcvt.s32.f32 %v201
        %v203 = vld [vmem:[%s160] sm:$0xff]
        %v204 = vsub.f32 %v202, %v203
        %v205 = vand.u32 2147483647, %v204
        %206 = vst [vmem:[%s192] sm:$0xff] %v205
        %s207 = sand.u32 %s82, 1
        %s208 = scalar_lea.sflag [#allocation4], %s207
        %s209 = sand.u32 %s82, 1
        %s210 = smul.addr %s209, 8
        %s211 = scalar_lea.vmem [#allocation7], %s210
        // Predicated region
        $region37: #{tpu_custom_call.1} parent=27 // pred_check
          %p212 = pneg %p92
        $region38: #{tpu_custom_call.1} parent=27 // pred_check_branch
          %214 = sbr.rel (%p212) target = $region40
        $region39: #{tpu_custom_call.1} parent=27 // pred_region
          %s216 = ssub.s32 128, 128
          %217 = vsyncadd %s208, %s216
          %s218 = smul.addr %s22, 128
          %s219 = scalar_lea.hbm %s2, %s218
          %s221 = sshll.u32 %s211, 4
          %s222 = int_to_ptr.vmem [resolvable:$true] %s221
          %224 = dma.vmem_to_hbm [thread:$0]  %s222, 128, %s219, %s208
        $region40: #{tpu_custom_call.1} parent=27 // pred_fallthru
          _
      $region28: #{tpu_custom_call.1} parent=5 // pred_fallthru
        _
      %p225 = scmp.le.s32.totalorder 2, %s17
      // Predicated region
      $region41: #{tpu_custom_call.1} parent=5 // pred_check
        %p226 = pneg %p225
      $region42: #{tpu_custom_call.1} parent=5 // pred_check_branch
        %228 = sbr.rel (%p226) target = $region44
      $region43: #{tpu_custom_call.1} parent=5 // pred_region
        %s229 = ssub.s32 %s17, 2
        // Predicated region
        $region45: #{tpu_custom_call.1} parent=43 // pred_check
          %p230 = pneg %p98
        $region46: #{tpu_custom_call.1} parent=43 // pred_check_branch
          %232 = sbr.rel (%p230) target = $region48
        $region47: #{tpu_custom_call.1} parent=43 // pred_region
          %s233 = sand.u32 %s83, 1
          %s234 = scalar_lea.sflag [#allocation4], %s233
          %s235 = sand.u32 %s83, 1
          %s236 = smul.addr %s235, 8
          %s237 = scalar_lea.vmem [#allocation7], %s236
          %238 = dma.done %s234, 128
        $region48: #{tpu_custom_call.1} parent=43 // pred_fallthru
          _
      $region44: #{tpu_custom_call.1} parent=5 // pred_fallthru
        _
    $region6: #{tpu_custom_call.1} parent=1 // loop_footer
      %s21 = sadd.s32 1, %s17
    $region7: #{tpu_custom_call.1} parent=1 // loop_footer_branch
      %16 = sbr.rel target = $region3
    $region8: #{tpu_custom_call.1} parent=1 // loop_exit
      _
    %239 = vsyncpa [#allocation3], 1
    %s240 = scalar_lea.sflag [#allocation3], 1
    %241 = vsyncpa %s240, 1
    %242 = vsyncpa [#allocation6], 1
    %s243 = scalar_lea.sflag [#allocation6], 1
    %244 = vsyncpa %s243, 1
    %245 = vsyncpa [#allocation4], 1
    %s246 = scalar_lea.sflag [#allocation4], 1
    %247 = vsyncpa %s246, 1

</llo_original>
